<compile_context>
chip_gen: v5e
topology: v5e:2x2
jax: 0.10.0
libtpu: 0.0.40
codegen_flags: <defaults>
</compile_context>

<pallas_src>
import functools
import math

import jax
import jax.numpy as jnp
from jax import lax
from jax.experimental import pallas as pl
from jax.experimental.pallas import tpu as pltpu


COMPUTE_DTYPE = jnp.bfloat16   # MXU inputs / inter-kernel activations (f32 accumulation)


# ----------------------------- helpers ---------------------------------------

def _full_spec(shape):
    n = len(shape)
    return pl.BlockSpec(shape, lambda *args: (0,) * n)


def _pick_block(n, candidates=(2048, 1024, 512, 256, 128, 64, 32, 16, 8)):
    """Largest candidate that evenly divides n, else the full extent."""
    for c in candidates:
        if n % c == 0:
            return c
    return n


_VMEM_LIMIT = None


def _vmem_limit_bytes():
    """Per-chip VMEM budget: ~3/4 of physical (48 MiB v7x, 96 MiB v5e/v6e)."""
    global _VMEM_LIMIT
    if _VMEM_LIMIT is None:
        try:
            cap = int(pltpu.get_tpu_info().vmem_capacity_bytes)
        except Exception:
            cap = 64 * 1024 * 1024
        _VMEM_LIMIT = min((cap * 3) // 4, 100 * 1024 * 1024)
    return _VMEM_LIMIT


def _layernorm_f32(x, gamma, beta, eps):
    x = x.astype(jnp.float32)
    mu = jnp.mean(x, axis=-1, keepdims=True)
    var = jnp.mean((x - mu) ** 2, axis=-1, keepdims=True)
    return (x - mu) * jax.lax.rsqrt(var + eps) * gamma + beta


# ----------------------------- Pallas kernels --------------------------------

def embed_ln_kernel(w_ref, p_ref, t_ref, g_ref, b_ref, o_ref, *, eps):
    # word-emb rows (gathered outside) + position rows (streamed by index_map) +
    # a single broadcast token-type row, then LayerNorm (dropout = identity).
    e = w_ref[0] + p_ref[...] + t_ref[...]                       # (tl, D) f32
    o_ref[0] = _layernorm_f32(e, g_ref[...], b_ref[...], eps).astype(o_ref.dtype)


def attn_block_kernel(x_ref, wq_ref, wk_ref, wv_ref, bq_ref, bk_ref, bv_ref,
                      wo_ref, bo_ref, g1_ref, be1_ref, o_ref, acc_sc,
                      *, scale, eps):
    """Fused per-(batch, head) step: QKV proj -> SDPA -> out-proj (head merge via
    accumulation over the head grid axis) -> +residual -> LayerNorm1."""
    h = pl.program_id(1)

    @pl.when(h == 0)
    def _():
        acc_sc[...] = jnp.zeros_like(acc_sc)

    x = x_ref[0]                                                 # (L, D) bf16, resident
    # Per-head projections: plain 2-D matmuls, no reshapes / transposes needed.
    q = (jnp.dot(x, wq_ref[h], preferred_element_type=jnp.float32)
         + bq_ref[h]).astype(COMPUTE_DTYPE)                      # (L, d)
    k = (jnp.dot(x, wk_ref[h], preferred_element_type=jnp.float32)
         + bk_ref[h]).astype(COMPUTE_DTYPE)
    v = (jnp.dot(x, wv_ref[h], preferred_element_type=jnp.float32)
         + bv_ref[h]).astype(COMPUTE_DTYPE)

    # scores = q @ k^T (contraction over d), f32.  Only one head's (L, L) in VMEM.
    s = lax.dot_general(q, k, (((1,), (1,)), ((), ())),
                        preferred_element_type=jnp.float32) * scale
    s = s - jnp.max(s, axis=-1, keepdims=True)
    p = jnp.exp(s)
    p = p * pl.reciprocal(jnp.sum(p, axis=-1, keepdims=True), approx=True)

    ctx = jnp.dot(p.astype(COMPUTE_DTYPE), v,
                  preferred_element_type=jnp.float32)            # (L, d)
    # Head merge fused into the output projection: sum per-head (L, d) @ (d, D).
    acc_sc[...] += jnp.dot(ctx.astype(COMPUTE_DTYPE), wo_ref[h],
                           preferred_element_type=jnp.float32)   # (L, D) f32

    @pl.when(h == pl.num_programs(1) - 1)
    def _():
        y = acc_sc[...] + bo_ref[...] + x_ref[0].astype(jnp.float32)   # + residual
        o_ref[0] = _layernorm_f32(y, g1_ref[...], be1_ref[...], eps).astype(o_ref.dtype)


def ffn_kernel(h1_ref, wf1_ref, bf1_ref, wf2_ref, bf2_ref, g2_ref, be2_ref,
               o_ref, acc_sc, *, eps):
    # FeedForward (tiled over F) + AddNorm2 for one (rows, D) block.
    # h1_ref is already bf16 and VMEM-resident across F tiles -> no per-tile recast.
    fj = pl.program_id(1)

    @pl.when(fj == 0)
    def _():
        acc_sc[...] = jnp.zeros_like(acc_sc)

    f = jnp.dot(h1_ref[...], wf1_ref[...],
                preferred_element_type=jnp.float32) + bf1_ref[...]
    f = jax.nn.gelu(f, approximate=False)                        # exact erf == nn.GELU()
    acc_sc[...] += jnp.dot(f.astype(COMPUTE_DTYPE), wf2_ref[...],
                           preferred_element_type=jnp.float32)

    @pl.when(fj == pl.num_programs(1) - 1)
    def _():
        y = acc_sc[...] + bf2_ref[...] + h1_ref[...].astype(jnp.float32)   # + residual h1
        o_ref[...] = _layernorm_f32(y, g2_ref[...], be2_ref[...], eps).astype(o_ref.dtype)


def cls_head_kernel(x_ref, wd_ref, bd_ref, wo_ref, bo_ref, o_ref):
    # ClsHead: dense -> tanh -> out projection on the [CLS] token features.
    pooled = jnp.tanh(jnp.dot(x_ref[...], wd_ref[...],
                              preferred_element_type=jnp.float32) + bd_ref[...])
    o_ref[...] = jnp.dot(pooled.astype(wo_ref.dtype), wo_ref[...],
                         preferred_element_type=jnp.float32) + bo_ref[...]


# ----------------------------- wrappers ---------------------------------------

def embed_ln(W, pos_emb, type_row, gamma, beta, eps):
    B, L, D = W.shape
    tl = _pick_block(L, (512, 256, 128, 64, 32, 16, 8))
    kernel = functools.partial(embed_ln_kernel, eps=eps)
    row_spec = pl.BlockSpec((1, tl, D), lambda b, l: (b, l, 0))
    return pl.pallas_call(
        kernel,
        out_shape=jax.ShapeDtypeStruct((B, L, D), COMPUTE_DTYPE),
        grid=(B, L // tl),
        in_specs=[row_spec,
                  pl.BlockSpec((tl, D), lambda b, l: (l, 0)),    # position rows per tile
                  pl.BlockSpec((1, D), lambda b, l: (0, 0)),     # token-type row (bcast)
                  pl.BlockSpec((1, D), lambda b, l: (0, 0)),     # gamma
                  pl.BlockSpec((1, D), lambda b, l: (0, 0))],    # beta
        out_specs=row_spec,
        compiler_params=pltpu.CompilerParams(
            dimension_semantics=("parallel", "parallel"),
            vmem_limit_bytes=_vmem_limit_bytes()),
    )(W, pos_emb, type_row, gamma, beta)


def attn_addnorm(x, blk, scale, eps):
    """x: (B, L, D) bf16 -> h1: (B, L, D) bf16 (attn + out-proj + AddNorm1 fused)."""
    B, L, D = x.shape
    H, _, d = blk["wq"].shape
    kernel = functools.partial(attn_block_kernel, scale=scale, eps=eps)
    x_spec = pl.BlockSpec((1, L, D), lambda b, h: (b, 0, 0))

    def const3(shape):
        return pl.BlockSpec(shape, lambda b, h: (0, 0, 0))       # resident whole grid

    def const2(shape):
        return pl.BlockSpec(shape, lambda b, h: (0, 0))

    return pl.pallas_call(
        kernel,
        out_shape=jax.ShapeDtypeStruct((B, L, D), COMPUTE_DTYPE),
        grid=(B, H),                                             # head = reduction axis
        in_specs=[x_spec,
                  const3((H, D, d)), const3((H, D, d)), const3((H, D, d)),   # wq wk wv
                  const3((H, 1, d)), const3((H, 1, d)), const3((H, 1, d)),   # bq bk bv
                  const3((H, d, D)),                                         # wo
                  const2((1, D)), const2((1, D)), const2((1, D))],           # bo g1 be1
        out_specs=x_spec,
        scratch_shapes=[pltpu.VMEM((L, D), jnp.float32)],        # out-proj accumulator
        compiler_params=pltpu.CompilerParams(
            dimension_semantics=("parallel", "arbitrary"),
            vmem_limit_bytes=_vmem_limit_bytes()),
    )(x, blk["wq"], blk["wk"], blk["wv"], blk["bq"], blk["bk"], blk["bv"],
      blk["wo"], blk["bo"], blk["g1"], blk["be1"])


def _ffn_tiling(BL, D, F, vmem_budget):
    rows = _pick_block(BL)                                       # up to 2048 rows / block

    def need(fb):
        # rough upper bound: double-buffered streams + live intermediates
        return (2 * (rows * D * 2 + D * fb * 2 + fb * 4 + fb * D * 2 + rows * D * 2)
                + rows * fb * 4 + rows * D * 4)

    for fb in [F] + [c for c in (4096, 2048, 1024, 512, 256, 128)
                     if c < F and F % c == 0]:
        if need(fb) <= vmem_budget:
            return rows, fb                                      # full-F when it fits
    return rows, _pick_block(F, (512, 256, 128, 64, 32, 16, 8))


def ffn_addnorm(h1, blk, eps):
    """h1: (B*L, D) bf16 -> (B*L, D) bf16 (FFN + AddNorm2, F-tiled reduction)."""
    BL, D = h1.shape
    F = blk["wf1"].shape[1]
    limit = _vmem_limit_bytes()
    rows, fblk = _ffn_tiling(BL, D, F, int(0.8 * limit))
    kernel = functools.partial(ffn_kernel, eps=eps)
    row_spec = pl.BlockSpec((rows, D), lambda i, j: (i, 0))
    vec_d = pl.BlockSpec((1, D), lambda i, j: (0, 0))
    return pl.pallas_call(
        kernel,
        out_shape=jax.ShapeDtypeStruct((BL, D), COMPUTE_DTYPE),
        grid=(BL // rows, F // fblk),                            # reduction axis (F) last
        in_specs=[row_spec,
                  pl.BlockSpec((D, fblk), lambda i, j: (0, j)),  # wf1 tile
                  pl.BlockSpec((1, fblk), lambda i, j: (0, j)),  # bf1 tile
                  pl.BlockSpec((fblk, D), lambda i, j: (j, 0)),  # wf2 tile
                  vec_d, vec_d, vec_d],                          # bf2, g2, be2
        out_specs=row_spec,
        scratch_shapes=[pltpu.VMEM((rows, D), jnp.float32)],     # FFN accumulator
        compiler_params=pltpu.CompilerParams(
            dimension_semantics=("parallel", "arbitrary"),
            vmem_limit_bytes=limit),
    )(h1, blk["wf1"], blk["bf1"], blk["wf2"], blk["bf2"], blk["g2"], blk["be2"])


def cls_head(x_cls, head):
    B, D = x_cls.shape
    C = head["wo"].shape[1]
    return pl.pallas_call(
        cls_head_kernel,
        out_shape=jax.ShapeDtypeStruct((B, C), jnp.float32),
        grid=(1,),
        in_specs=[_full_spec((B, D)),
                  _full_spec((D, D)), _full_spec((1, D)),
                  _full_spec((D, C)), _full_spec((1, C))],
        out_specs=_full_spec((B, C)),
        compiler_params=pltpu.CompilerParams(vmem_limit_bytes=_vmem_limit_bytes()),
    )(x_cls, head["wd"], head["bd"], head["wo"], head["bo"])


# ----------------------------- params -----------------------------------------

def init_params(key, *, vocab, max_pos, n_types, D, F, n_heads, n_blocks,
                n_classes, pad_id):
    d = D // n_heads
    keys = iter(jax.random.split(key, 16 + 16 * n_blocks))

    def dense(shape, scale=0.02, dtype=COMPUTE_DTYPE):
        return (jax.random.normal(next(keys), shape, jnp.float32) * scale).astype(dtype)

    p = {}
    word = dense((vocab, D), dtype=jnp.float32)
    word = word.at[pad_id].set(0.0)                 # torch padding_idx row is zeroed
    p["word_emb"] = word
    p["pos_emb"] = dense((max_pos, D), dtype=jnp.float32)
    p["type_emb"] = dense((n_types, D), dtype=jnp.float32)
    p["emb_gamma"] = jnp.ones((1, D), jnp.float32)
    p["emb_beta"] = jnp.zeros((1, D), jnp.float32)

    blocks = []
    for _ in range(n_blocks):
        blk = dict(
            # per-head Q/K/V projection weights (H, D, d) and out-proj rows (H, d, D)
            wq=dense((n_heads, D, d)), wk=dense((n_heads, D, d)), wv=dense((n_heads, D, d)),
            bq=jnp.zeros((n_heads, 1, d), jnp.float32),
            bk=jnp.zeros((n_heads, 1, d), jnp.float32),
            bv=jnp.zeros((n_heads, 1, d), jnp.float32),
            wo=dense((n_heads, d, D)), bo=jnp.zeros((1, D), jnp.float32),
            g1=jnp.ones((1, D), jnp.float32), be1=jnp.zeros((1, D), jnp.float32),
            wf1=dense((D, F)), bf1=jnp.zeros((1, F), jnp.float32),
            wf2=dense((F, D)), bf2=jnp.zeros((1, D), jnp.float32),
            g2=jnp.ones((1, D), jnp.float32), be2=jnp.zeros((1, D), jnp.float32),
        )
        blocks.append(blk)
    p["blocks"] = blocks

    p["head"] = dict(
        wd=dense((D, D)), bd=jnp.zeros((1, D), jnp.float32),
        wo=dense((D, n_classes)), bo=jnp.zeros((1, n_classes), jnp.float32),
    )
    return p


# ----------------------------- forward -----------------------------------------

def encoder_wrapper_forward(params, input_ids, *, n_heads, eps):
    B, L = input_ids.shape
    D = params["word_emb"].shape[1]
    d = D // n_heads
    scale = 1.0 / math.sqrt(d)

    # EncoderWrapper: token_type_ids = ones -> a single token-type embedding row.
    type_row = params["type_emb"][1:2]                                 # (1, D) f32

    # Word-embedding gather (XLA); position / token-type rows are NOT materialized
    # as (B*L, D) — they stream straight from their tables inside the embed kernel.
    W = jnp.take(params["word_emb"], input_ids, axis=0)                # (B, L, D) f32
    x = embed_ln(W, params["pos_emb"], type_row,
                 params["emb_gamma"], params["emb_beta"], eps)         # (B, L, D) bf16

    for blk in params["blocks"]:
        h1 = attn_addnorm(x, blk, scale, eps)                          # (B, L, D) bf16
        x = ffn_addnorm(h1.reshape(B * L, D), blk, eps).reshape(B, L, D)

    x_cls = x[:, 0, :]                                                 # [CLS] token
    logits = cls_head(x_cls, params["head"])
    return logits


# ----------------------------- main ---------------------------------------------

if __name__ == "__main__":
    # Small config consistent with the module's constructor.
    VOCAB = 128
    D = 32           # embed_dim
    H = 4            # num_heads
    FF = 64          # ff_dim
    NBLOCKS = 2
    MAX_POS = 64
    NTYPES = 2
    NCLASSES = 4
    PAD_ID = 0
    EPS = 1e-12
    B, L = 2, 8

    key = jax.random.PRNGKey(0)
    k_param, k_ids = jax.random.split(key)

    params = init_params(k_param, vocab=VOCAB, max_pos=MAX_POS, n_types=NTYPES,
                         D=D, F=FF, n_heads=H, n_blocks=NBLOCKS,
                         n_classes=NCLASSES, pad_id=PAD_ID)

    input_ids = jax.random.randint(k_ids, (B, L), 1, VOCAB, dtype=jnp.int32)

    out = encoder_wrapper_forward(params, input_ids, n_heads=H, eps=EPS)
    out = jax.block_until_ready(out)
    assert out.shape == (B, NCLASSES)
    assert jnp.all(jnp.isfinite(out))
    print("KERNEL_OK")
</pallas_src>

<mosaic_0001>
module attributes {stable_mosaic.version = 11 : i64} {
  func.func @embed_ln_kernel(%arg0: i32, %arg1: i32, %arg2: memref<1x8x32xf32, #tpu.memory_space<vmem>>, %arg3: memref<8x32xf32, #tpu.memory_space<vmem>>, %arg4: memref<1x32xf32, #tpu.memory_space<vmem>>, %arg5: memref<1x32xf32, #tpu.memory_space<vmem>>, %arg6: memref<1x32xf32, #tpu.memory_space<vmem>>, %arg7: memref<1x8x32xbf16, #tpu.memory_space<vmem>>) attributes {dimension_semantics = [#tpu.dimension_semantics<parallel>, #tpu.dimension_semantics<parallel>], iteration_bounds = array<i64: 2, 1>, scalar_prefetch = 0 : i64, scratch_operands = 0 : i64, tpu.core_type = #tpu.core_type<tc>, window_params = [{transform_indices = @transform_0, window_bounds = array<i64: 1, 8, 32>}, {transform_indices = @transform_1, window_bounds = array<i64: 8, 32>}, {pipeline_mode = #tpu.pipeline_mode<synchronous>, transform_indices = @transform_2, window_bounds = array<i64: 1, 32>}, {pipeline_mode = #tpu.pipeline_mode<synchronous>, transform_indices = @transform_3, window_bounds = array<i64: 1, 32>}, {pipeline_mode = #tpu.pipeline_mode<synchronous>, transform_indices = @transform_4, window_bounds = array<i64: 1, 32>}, {transform_indices = @transform_5, window_bounds = array<i64: 1, 8, 32>}]} {
    %c0 = arith.constant 0 : index
    %c0_0 = arith.constant 0 : index
    %c0_1 = arith.constant 0 : index
    %0 = vector.load %arg2[%c0, %c0_0, %c0_1] : memref<1x8x32xf32, #tpu.memory_space<vmem>>, vector<1x8x32xf32>
    %1 = vector.shape_cast %0 : vector<1x8x32xf32> to vector<8x32xf32>
    %c0_2 = arith.constant 0 : index
    %c0_3 = arith.constant 0 : index
    %2 = vector.load %arg3[%c0_2, %c0_3] : memref<8x32xf32, #tpu.memory_space<vmem>>, vector<8x32xf32>
    %3 = arith.addf %1, %2 : vector<8x32xf32>
    %c0_4 = arith.constant 0 : index
    %c0_5 = arith.constant 0 : index
    %4 = vector.load %arg4[%c0_4, %c0_5] : memref<1x32xf32, #tpu.memory_space<vmem>>, vector<1x32xf32>
    %5 = vector.broadcast %4 : vector<1x32xf32> to vector<8x32xf32>
    %6 = arith.addf %3, %5 : vector<8x32xf32>
    %c0_6 = arith.constant 0 : index
    %c0_7 = arith.constant 0 : index
    %7 = vector.load %arg5[%c0_6, %c0_7] : memref<1x32xf32, #tpu.memory_space<vmem>>, vector<1x32xf32>
    %c0_8 = arith.constant 0 : index
    %c0_9 = arith.constant 0 : index
    %8 = vector.load %arg6[%c0_8, %c0_9] : memref<1x32xf32, #tpu.memory_space<vmem>>, vector<1x32xf32>
    %cst = arith.constant dense<0.000000e+00> : vector<8xf32>
    %9 = vector.multi_reduction <add>, %6, %cst [1] : vector<8x32xf32> to vector<8xf32>
    %10 = vector.shape_cast %9 : vector<8xf32> to vector<8x1xf32>
    %cst_10 = arith.constant 3.200000e+01 : f32
    %11 = vector.broadcast %cst_10 : f32 to vector<8x1xf32>
    %12 = arith.divf %10, %11 : vector<8x1xf32>
    %13 = vector.broadcast %12 : vector<8x1xf32> to vector<8x32xf32>
    %14 = arith.subf %6, %13 : vector<8x32xf32>
    %15 = arith.mulf %14, %14 : vector<8x32xf32>
    %cst_11 = arith.constant dense<0.000000e+00> : vector<8xf32>
    %16 = vector.multi_reduction <add>, %15, %cst_11 [1] : vector<8x32xf32> to vector<8xf32>
    %17 = vector.shape_cast %16 : vector<8xf32> to vector<8x1xf32>
    %cst_12 = arith.constant 3.200000e+01 : f32
    %18 = vector.broadcast %cst_12 : f32 to vector<8x1xf32>
    %19 = arith.divf %17, %18 : vector<8x1xf32>
    %20 = vector.broadcast %12 : vector<8x1xf32> to vector<8x32xf32>
    %21 = arith.subf %6, %20 : vector<8x32xf32>
    %cst_13 = arith.constant 9.99999996E-13 : f32
    %22 = vector.broadcast %cst_13 : f32 to vector<8x1xf32>
    %23 = arith.addf %19, %22 : vector<8x1xf32>
    %24 = math.rsqrt %23 : vector<8x1xf32>
    %25 = vector.broadcast %24 : vector<8x1xf32> to vector<8x32xf32>
    %26 = arith.mulf %21, %25 : vector<8x32xf32>
    %27 = vector.broadcast %7 : vector<1x32xf32> to vector<8x32xf32>
    %28 = arith.mulf %26, %27 : vector<8x32xf32>
    %29 = vector.broadcast %8 : vector<1x32xf32> to vector<8x32xf32>
    %30 = arith.addf %28, %29 : vector<8x32xf32>
    %31 = arith.truncf %30 : vector<8x32xf32> to vector<8x32xbf16>
    %c0_14 = arith.constant 0 : index
    %c0_15 = arith.constant 0 : index
    %c0_16 = arith.constant 0 : index
    %32 = vector.load %arg7[%c0_14, %c0_15, %c0_16] : memref<1x8x32xbf16, #tpu.memory_space<vmem>>, vector<1x8x32xbf16>
    %33 = vector.shape_cast %32 : vector<1x8x32xbf16> to vector<8x32xbf16>
    %34 = vector.shape_cast %31 : vector<8x32xbf16> to vector<1x8x32xbf16>
    tpu.vector_store %arg7[%c0_14, %c0_15, %c0_16], %34 {strides = array<i32>} : memref<1x8x32xbf16, #tpu.memory_space<vmem>>, vector<1x8x32xbf16>,
    return
  }
  func.func @transform_0(%arg0: i32, %arg1: i32) -> (i32, i32, i32) {
    %c0_i32 = arith.constant 0 : i32
    %c0_i32_0 = arith.constant 0 : i32
    return %arg0, %arg1, %c0_i32 : i32, i32, i32
  }
  func.func @transform_1(%arg0: i32, %arg1: i32) -> (i32, i32) {
    %c0_i32 = arith.constant 0 : i32
    %c0_i32_0 = arith.constant 0 : i32
    return %arg1, %c0_i32 : i32, i32
  }
  func.func @transform_2(%arg0: i32, %arg1: i32) -> (i32, i32) {
    %c0_i32 = arith.constant 0 : i32
    %c0_i32_0 = arith.constant 0 : i32
    %c0_i32_1 = arith.constant 0 : i32
    return %c0_i32, %c0_i32_0 : i32, i32
  }
  func.func @transform_3(%arg0: i32, %arg1: i32) -> (i32, i32) {
    %c0_i32 = arith.constant 0 : i32
    %c0_i32_0 = arith.constant 0 : i32
    %c0_i32_1 = arith.constant 0 : i32
    return %c0_i32, %c0_i32_0 : i32, i32
  }
  func.func @transform_4(%arg0: i32, %arg1: i32) -> (i32, i32) {
    %c0_i32 = arith.constant 0 : i32
    %c0_i32_0 = arith.constant 0 : i32
    %c0_i32_1 = arith.constant 0 : i32
    return %c0_i32, %c0_i32_0 : i32, i32
  }
  func.func @transform_5(%arg0: i32, %arg1: i32) -> (i32, i32, i32) {
    %c0_i32 = arith.constant 0 : i32
    %c0_i32_0 = arith.constant 0 : i32
    return %arg0, %arg1, %c0_i32 : i32, i32, i32
  }
}

</mosaic_0001>

<llo_original>
// kernel: tpu_custom_call.1
$region0: #{tpu_custom_call.1}
  #allocation0 [shape = 'u32[]', space=smem, size = 0x4, offset = 0x4, fixed_abs, tag = 'smem constant byte address 0x4 - core index']
  #allocation1 [shape = 'u32[72,128]{1,0:T(1,128)}', space=vmem, size = 0x9000, scoped, tag = 'internal scratch']
  %s0 = inlined_call_operand.vmem [shape: f32[2,8,32], index: 0, kind: input, shape index: {}]
  %s1 = inlined_call_operand.vmem [shape: f32[64,32], index: 1, kind: input, shape index: {}]
  %s2 = inlined_call_operand.vmem [shape: f32[1,32], index: 2, kind: input, shape index: {}]
  %s3 = inlined_call_operand.vmem [shape: f32[1,32], index: 3, kind: input, shape index: {}]
  %s4 = inlined_call_operand.vmem [shape: f32[1,32], index: 4, kind: input, shape index: {}]
  %s5 = inlined_call_operand.hbm [shape: bf16[2,8,32], index: 5, kind: output, shape index: {}]
  %s6 = sld [smem:[#allocation0]]
  $region53: #{tpu_custom_call.1} parent=0
    _
  %s8 = ssub.s32 1, %s6
  %s9 = scalar_select 0, %s8, %s6
  $region1: #{tpu_custom_call.1} parent=0
    #allocation2 [shape = 'u8[4096]{0}', space=vmem, size = 0x1000, scoped, tag = 'output window, operand 0']
    #allocation3 [shape = 's32[2]{0}', space=sflag, size = 0x8, scoped, tag = 'scoped memory for tpu_custom_call.1']
    %10 = vsyncpa [#allocation3], 0
    %s11 = scalar_lea.sflag [#allocation3], 1
    %12 = vsyncpa %s11, 0
    loop: start=0, step=1, limit=4
    $region2: #{tpu_custom_call.1} parent=1 // loop_pre_header
      _
    $region3: #{tpu_custom_call.1} parent=1 // loop_header
      %s14 = sphi 0, %s18
      %p15 = scmp.ge.s32.totalorder %s14, 4
      %s21 = sphi 0, %s33
      %s22 = sphi 0, %s29
      %s23 = sphi 0, %s21
      %s24 = sphi 0, %s22
      %s25 = sphi 0, %s23
      %s26 = sphi 0, %s24
      %s38 = sphi 0, %s40
      %s41 = sphi 0, %s38
      %s42 = sphi 0, %s41
      %s58 = sphi 0, %s42
      %s64 = sphi 0, %s66
      %s67 = sphi 0, %s64
      %s68 = sphi 0, %s67
      %s84 = sphi 0, %s68
      %s88 = sphi 0, %s88
      %s90 = sphi 0, %s88
      %s91 = sphi 0, %s90
      %s105 = sphi 0, %s91
      %s109 = sphi 0, %s109
      %s111 = sphi 0, %s109
      %s112 = sphi 0, %s111
      %s126 = sphi 0, %s112
      %s130 = sphi 0, %s130
      %s132 = sphi 0, %s130
      %s133 = sphi 0, %s132
      %s147 = sphi 0, %s133
      %s155 = sphi 0, %s157
      %s158 = sphi 0, %s155
      %s159 = sphi 0, %s158
      %s175 = sphi 0, %s159
    $region4: #{tpu_custom_call.1} parent=1 // loop_header_branch
      %17 = sbr.rel (%p15) target = $region8
    $region5: #{tpu_custom_call.1} parent=1 // loop_body
      %s19 = ssub.s32 %s14, 1
      %s20 = ssub.s32 %s14, 2
      %s27 = sadd.s32 1, %s22
      %p28 = scmp.ge.s32.totalorder %s27, 1
      %s29 = scalar_select %p28, 0, %s27
      %s30 = sadd.s32 1, %s21
      %s31 = scalar_select %p28, %s30, %s21
      %p32 = scmp.ge.s32.totalorder %s31, 2
      %s33 = scalar_select %p32, 0, %s31
      %s34 = ssub.s32 %s21, %s33
      %s35 = ssub.s32 %s22, %s29
      %s36 = sor.u32 %s34, %s35
      %p37 = scmp.eq.s32.totalorder %s36, 0
      %s39 = sadd.s32 %s38, 1
      %s40 = scalar_select %p37, %s38, %s39
      %p43 = pneg %p37
      %p44 = scmp.eq.s32.totalorder %s14, 1
      %p45 = por %p43, %p44
      %p46 = scmp.ne.s32.totalorder %s38, %s41
      %p47 = scmp.eq.s32.totalorder %s14, 0
      %p48 = por %p46, %p47
      %p49 = scmp.ne.s32.totalorder %s38, %s41
      %p50 = scmp.eq.s32.totalorder %s19, 1
      %p51 = por %p49, %p50
      %p52 = scmp.ne.s32.totalorder %s41, %s42
      %p53 = scmp.eq.s32.totalorder %s19, 0
      %p54 = por %p52, %p53
      %p55 = scmp.ne.s32.totalorder %s41, %s42
      %p56 = scmp.eq.s32.totalorder %s20, 1
      %p57 = por %p55, %p56
      %p59 = scmp.ne.s32.totalorder %s42, %s58
      %p60 = scmp.eq.s32.totalorder %s20, 0
      %p61 = por %p59, %p60
      %s62 = ssub.s32 %s22, %s29
      %p63 = scmp.eq.s32.totalorder %s62, 0
      %s65 = sadd.s32 %s64, 1
      %s66 = scalar_select %p63, %s64, %s65
      %p69 = pneg %p63
      %p70 = scmp.eq.s32.totalorder %s14, 1
      %p71 = por %p69, %p70
      %p72 = scmp.ne.s32.totalorder %s64, %s67
      %p73 = scmp.eq.s32.totalorder %s14, 0
      %p74 = por %p72, %p73
      %p75 = scmp.ne.s32.totalorder %s64, %s67
      %p76 = scmp.eq.s32.totalorder %s19, 1
      %p77 = por %p75, %p76
      %p78 = scmp.ne.s32.totalorder %s67, %s68
      %p79 = scmp.eq.s32.totalorder %s19, 0
      %p80 = por %p78, %p79
      %p81 = scmp.ne.s32.totalorder %s67, %s68
      %p82 = scmp.eq.s32.totalorder %s20, 1
      %p83 = por %p81, %p82
      %p85 = scmp.ne.s32.totalorder %s68, %s84
      %p86 = scmp.eq.s32.totalorder %s20, 0
      %p87 = por %p85, %p86
      %s89 = sadd.s32 %s88, 1
      %p92 = scmp.eq.s32.totalorder %s14, 1
      %p93 = scmp.ne.s32.totalorder %s88, %s90
      %p94 = scmp.eq.s32.totalorder %s14, 0
      %p95 = por %p93, %p94
      %p96 = scmp.ne.s32.totalorder %s88, %s90
      %p97 = scmp.eq.s32.totalorder %s19, 1
      %p98 = por %p96, %p97
      %p99 = scmp.ne.s32.totalorder %s90, %s91
      %p100 = scmp.eq.s32.totalorder %s19, 0
      %p101 = por %p99, %p100
      %p102 = scmp.ne.s32.totalorder %s90, %s91
      %p103 = scmp.eq.s32.totalorder %s20, 1
      %p104 = por %p102, %p103
      %p106 = scmp.ne.s32.totalorder %s91, %s105
      %p107 = scmp.eq.s32.totalorder %s20, 0
      %p108 = por %p106, %p107
      %s110 = sadd.s32 %s109, 1
      %p113 = scmp.eq.s32.totalorder %s14, 1
      %p114 = scmp.ne.s32.totalorder %s109, %s111
      %p115 = scmp.eq.s32.totalorder %s14, 0
      %p116 = por %p114, %p115
      %p117 = scmp.ne.s32.totalorder %s109, %s111
      %p118 = scmp.eq.s32.totalorder %s19, 1
      %p119 = por %p117, %p118
      %p120 = scmp.ne.s32.totalorder %s111, %s112
      %p121 = scmp.eq.s32.totalorder %s19, 0
      %p122 = por %p120, %p121
      %p123 = scmp.ne.s32.totalorder %s111, %s112
      %p124 = scmp.eq.s32.totalorder %s20, 1
      %p125 = por %p123, %p124
      %p127 = scmp.ne.s32.totalorder %s112, %s126
      %p128 = scmp.eq.s32.totalorder %s20, 0
      %p129 = por %p127, %p128
      %s131 = sadd.s32 %s130, 1
      %p134 = scmp.eq.s32.totalorder %s14, 1
      %p135 = scmp.ne.s32.totalorder %s130, %s132
      %p136 = scmp.eq.s32.totalorder %s14, 0
      %p137 = por %p135, %p136
      %p138 = scmp.ne.s32.totalorder %s130, %s132
      %p139 = scmp.eq.s32.totalorder %s19, 1
      %p140 = por %p138, %p139
      %p141 = scmp.ne.s32.totalorder %s132, %s133
      %p142 = scmp.eq.s32.totalorder %s19, 0
      %p143 = por %p141, %p142
      %p144 = scmp.ne.s32.totalorder %s132, %s133
      %p145 = scmp.eq.s32.totalorder %s20, 1
      %p146 = por %p144, %p145
      %p148 = scmp.ne.s32.totalorder %s133, %s147
      %p149 = scmp.eq.s32.totalorder %s20, 0
      %p150 = por %p148, %p149
      %s151 = ssub.s32 %s21, %s33
      %s152 = ssub.s32 %s22, %s29
      %s153 = sor.u32 %s151, %s152
      %p154 = scmp.eq.s32.totalorder %s153, 0
      %s156 = sadd.s32 %s155, 1
      %s157 = scalar_select %p154, %s155, %s156
      %p160 = pneg %p154
      %p161 = scmp.eq.s32.totalorder %s14, 1
      %p162 = por %p160, %p161
      %p163 = scmp.ne.s32.totalorder %s155, %s158
      %p164 = scmp.eq.s32.totalorder %s14, 0
      %p165 = por %p163, %p164
      %p166 = scmp.ne.s32.totalorder %s155, %s158
      %p167 = scmp.eq.s32.totalorder %s19, 1
      %p168 = por %p166, %p167
      %p169 = scmp.ne.s32.totalorder %s158, %s159
      %p170 = scmp.eq.s32.totalorder %s19, 0
      %p171 = por %p169, %p170
      %p172 = scmp.ne.s32.totalorder %s158, %s159
      %p173 = scmp.eq.s32.totalorder %s20, 1
      %p174 = por %p172, %p173
      %p176 = scmp.ne.s32.totalorder %s159, %s175
      %p177 = scmp.eq.s32.totalorder %s20, 0
      %p178 = por %p176, %p177
      %p179 = scmp.le.s32.totalorder 1, %s14
      %p180 = scmp.lt.s32.totalorder %s14, 3
      %p181 = pnand %p179, %p180
      %p182 = pneg %p181
      // Predicated region
      $region9: #{tpu_custom_call.1} parent=5 // pred_check
        _
      $region10: #{tpu_custom_call.1} parent=5 // pred_check_branch
        %184 = sbr.rel (%p181) target = $region12
      $region11: #{tpu_custom_call.1} parent=5 // pred_region
        %s185 = ssub.s32 %s14, 1
        // Predicated region
        $region13: #{tpu_custom_call.1} parent=11 // pred_check
          %p186 = pneg %p80
        $region14: #{tpu_custom_call.1} parent=11 // pred_check_branch
          %188 = sbr.rel (%p186) target = $region16
        $region15: #{tpu_custom_call.1} parent=11 // pred_region
          %p189 = scmp.lt.s32.totalorder %s24, 7
          %s190 = scalar_select %p189, %s24, 7
          %s191 = smul.addr %s190, 8
          %s192 = scalar_lea.vmem %s1, %s191
        $region16: #{tpu_custom_call.1} parent=11 // pred_fallthru
          _
        // Predicated region
        $region17: #{tpu_custom_call.1} parent=11 // pred_check
          %p193 = pneg %p101
        $region18: #{tpu_custom_call.1} parent=11 // pred_check_branch
          %195 = sbr.rel (%p193) target = $region20
        $region19: #{tpu_custom_call.1} parent=11 // pred_region
          _
        $region20: #{tpu_custom_call.1} parent=11 // pred_fallthru
          _
        // Predicated region
        $region21: #{tpu_custom_call.1} parent=11 // pred_check
          %p196 = pneg %p122
        $region22: #{tpu_custom_call.1} parent=11 // pred_check_branch
          %198 = sbr.rel (%p196) target = $region24
        $region23: #{tpu_custom_call.1} parent=11 // pred_region
          _
        $region24: #{tpu_custom_call.1} parent=11 // pred_fallthru
          _
        // Predicated region
        $region25: #{tpu_custom_call.1} parent=11 // pred_check
          %p199 = pneg %p143
        $region26: #{tpu_custom_call.1} parent=11 // pred_check_branch
          %201 = sbr.rel (%p199) target = $region28
        $region27: #{tpu_custom_call.1} parent=11 // pred_region
          _
        $region28: #{tpu_custom_call.1} parent=11 // pred_fallthru
          _
      $region12: #{tpu_custom_call.1} parent=5 // pred_fallthru
        _
      %p202 = scmp.lt.s32.totalorder %s14, 2
      // Predicated region
      $region29: #{tpu_custom_call.1} parent=5 // pred_check
        %p203 = pneg %p202
      $region30: #{tpu_custom_call.1} parent=5 // pred_check_branch
        %205 = sbr.rel (%p203) target = $region32
      $region31: #{tpu_custom_call.1} parent=5 // pred_region
        // Predicated region
        $region33: #{tpu_custom_call.1} parent=31 // pred_check
          %p206 = pneg %p48
        $region34: #{tpu_custom_call.1} parent=31 // pred_check_branch
          %208 = sbr.rel (%p206) target = $region36
        $region35: #{tpu_custom_call.1} parent=31 // pred_region
          %p209 = scmp.lt.s32.totalorder %s21, 1
          %s210 = scalar_select %p209, %s21, 1
          %p211 = scmp.lt.s32.totalorder %s22, 0
          %s212 = scalar_select %p211, %s22, 0
          %s213 = sadd.s32 %s212, %s210
          %s214 = smul.addr %s213, 8
          %s215 = scalar_lea.vmem %s0, %s214
        $region36: #{tpu_custom_call.1} parent=31 // pred_fallthru
          _
      $region32: #{tpu_custom_call.1} parent=5 // pred_fallthru
        _
      %p216 = scmp.le.s32.totalorder 1, %s14
      %p217 = scmp.lt.s32.totalorder %s14, 3
      %p218 = pnand %p216, %p217
      %p219 = pneg %p218
      // Predicated region
      $region37: #{tpu_custom_call.1} parent=5 // pred_check
        _
      $region38: #{tpu_custom_call.1} parent=5 // pred_check_branch
        %221 = sbr.rel (%p218) target = $region40
      $region39: #{tpu_custom_call.1} parent=5 // pred_region
        %s222 = ssub.s32 %s14, 1
        %p223 = scmp.lt.s32.totalorder %s23, 1
        %s224 = scalar_select %p223, %s23, 1
        %p225 = scmp.lt.s32.totalorder %s24, 0
        %s226 = scalar_select %p225, %s24, 0
        %s227 = sadd.s32 %s226, %s224
        %s228 = smul.addr %s227, 8
        %s229 = scalar_lea.vmem %s0, %s228
        %p230 = pneg %p54
        %p231 = pneg %p51
        %p232 = scmp.lt.s32.totalorder %s24, 7
        %s233 = scalar_select %p232, %s24, 7
        %s234 = smul.addr %s233, 8
        %s235 = scalar_lea.vmem %s1, %s234
        %p236 = pneg %p80
        %p237 = pneg %p77
        %p238 = pneg %p101
        %p239 = pneg %p98
        %p240 = pneg %p122
        %p241 = pneg %p119
        %p242 = pneg %p143
        %p243 = pneg %p140
        %p244 = pneg %p171
        %p245 = pneg %p168
        %s246 = sand.u32 %s158, 1
        %s247 = scalar_lea.sflag [#allocation3], %s246
        %s248 = sand.u32 %s158, 1
        %s249 = smul.addr %s248, 4
        %s250 = scalar_lea.vmem [#allocation2], %s249
        %p251 = scmp.lt.s32.totalorder %s23, 1
        %s252 = scalar_select %p251, %s23, 1
        %p253 = scmp.lt.s32.totalorder %s24, 0
        %s254 = scalar_select %p253, %s24, 0
        %s255 = sadd.s32 %s254, %s252
        %s256 = smul.addr %s255, 8
        %s257 = scalar_lea.vmem %s0, %s256
        %p258 = scmp.lt.s32.totalorder %s24, 7
        %s259 = scalar_select %p258, %s24, 7
        %s260 = smul.addr %s259, 8
        %s261 = scalar_lea.vmem %s1, %s260
        %v262 = vld [vmem:[%s257] sm:$0xff]
        %v263 = vld [vmem:[%s261] sm:$0xff]
        %v264 = vadd.f32 %v262, %v263
        %v265 = vld [vmem:[%s2] sm:$0x1]
        %v267 = vperm.slane %v265, 0
        %v269 = vadd.f32 %v264, %v267
        %v270 = vld [vmem:[%s3] sm:$0x1]
        %v271 = vld [vmem:[%s4] sm:$0x1]
        %vm272 = vcmask 261120
        %v273 = vsel %vm272, %v269, 0.0
        %274 = vadd.xlane.f32.xlu0 %v273
        %v275 = vpop.xlane.xlu0 %274
        %v276 = vrcp.pop 32.0
        %v277 = vmul.f32 32.0, %v276
        %v278 = vsub.f32 1.0, %v277
        %v279 = vmul.f32 %v276, %v278
        %v280 = vadd.f32 %v276, %v279
        %vm281 = vweird.f32 %v276
        %v282 = vsel %vm281, %v276, %v280
        %v283 = vmul.f32 %v275, %v282
        %v284 = vsub.f32 %v269, %v283
        %v285 = vmul.f32 %v284, %v284
        %v286 = vsel %vm272, %v285, 0.0
        %287 = vadd.xlane.f32.xlu0 %v286
        %v288 = vpop.xlane.xlu0 %287
        %v289 = vmul.f32 %v288, %v282
        %v290 = vadd.f32 %v289, 1e-12
        %v291 = vrsqrt.pop %v290
        %v292 = vmul.f32 %v291, %v290
        %v293 = vmul.f32 %v292, %v291
        %v294 = vmul.f32 0.5, %v293
        %v295 = vsub.f32 1.5, %v294
        %v296 = vmul.f32 %v291, %v295
        %vm297 = vweird.f32 %v290
        %vm298 = vweird.f32 %v291
        %vm299 = vmor %vm297, %vm298
        %v300 = vsel %vm299, %v291, %v296
        %v301 = vmul.f32 %v284, %v300
        %v303 = vperm.slane %v270, 0
        %v305 = vmul.f32 %v301, %v303
        %v307 = vperm.slane %v271, 0
        %v309 = vadd.f32 %v305, %v307
        %v310 = vpack.c.bf16 %v309, %v309
        %vm311 = vcmask 257024
        %312 = vst.msk [vmem:[%s250] sm:$0xf] %vm311, %v310
        %s313 = sand.u32 %s158, 1
        %s314 = scalar_lea.sflag [#allocation3], %s313
        %s315 = sand.u32 %s158, 1
        %s316 = smul.addr %s315, 4
        %s317 = scalar_lea.vmem [#allocation2], %s316
        // Predicated region
        $region41: #{tpu_custom_call.1} parent=39 // pred_check
          %p318 = pneg %p168
        $region42: #{tpu_custom_call.1} parent=39 // pred_check_branch
          %320 = sbr.rel (%p318) target = $region44
        $region43: #{tpu_custom_call.1} parent=39 // pred_region
          %322 = vsyncadd %s314, 0
          %s323 = sadd.s32 %s24, %s23
          %s324 = smul.addr %s323, 4
          %s325 = scalar_lea.hbm %s5, %s324
          %s327 = sshll.u32 %s317, 4
          %s328 = int_to_ptr.vmem [resolvable:$true] %s327
          %s329 = sshll.u32 %s325, 4
          %s330 = int_to_ptr.hbm [resolvable:$true] %s329
          %332 = dma.vmem_to_hbm [thread:$0]  %s328, 64, %s330, %s314
        $region44: #{tpu_custom_call.1} parent=39 // pred_fallthru
          _
      $region40: #{tpu_custom_call.1} parent=5 // pred_fallthru
        _
      %p333 = scmp.le.s32.totalorder 2, %s14
      // Predicated region
      $region45: #{tpu_custom_call.1} parent=5 // pred_check
        %p334 = pneg %p333
      $region46: #{tpu_custom_call.1} parent=5 // pred_check_branch
        %336 = sbr.rel (%p334) target = $region48
      $region47: #{tpu_custom_call.1} parent=5 // pred_region
        %s337 = ssub.s32 %s14, 2
        // Predicated region
        $region49: #{tpu_custom_call.1} parent=47 // pred_check
          %p338 = pneg %p174
        $region50: #{tpu_custom_call.1} parent=47 // pred_check_branch
          %340 = sbr.rel (%p338) target = $region52
        $region51: #{tpu_custom_call.1} parent=47 // pred_region
          %s341 = sand.u32 %s159, 1
          %s342 = scalar_lea.sflag [#allocation3], %s341
          %s343 = sand.u32 %s159, 1
          %s344 = smul.addr %s343, 4
          %s345 = scalar_lea.vmem [#allocation2], %s344
          %347 = dma.done %s342, 64
        $region52: #{tpu_custom_call.1} parent=47 // pred_fallthru
          _
      $region48: #{tpu_custom_call.1} parent=5 // pred_fallthru
        _
    $region6: #{tpu_custom_call.1} parent=1 // loop_footer
      %s18 = sadd.s32 1, %s14
    $region7: #{tpu_custom_call.1} parent=1 // loop_footer_branch
      %13 = sbr.rel target = $region3
    $region8: #{tpu_custom_call.1} parent=1 // loop_exit
      _
    %348 = vsyncpa [#allocation3], 1
    %s349 = scalar_lea.sflag [#allocation3], 1
    %350 = vsyncpa %s349, 1

</llo_original>
